<compile_context>
chip_gen: v6e
topology: v6e:2x2x1
jax: 0.10.0
libtpu: 0.0.40
codegen_flags: <defaults>
</compile_context>

<pallas_src>
import functools

import jax
import jax.numpy as jnp
from jax import lax
from jax.experimental import pallas as pl
from jax.experimental.pallas import tpu as pltpu


def _dice_kernel(x_ref, t_ref, o_ref, acc_i, acc_x, acc_t, *,
                 chunks_per_tile, last_full_chunks, last_partial_cols,
                 m_valid, smooth, carry_in_vregs, approx_reciprocal):
    # x_ref / t_ref : (M, N_TILE) input tiles (native dtype) in VMEM.
    # o_ref         : (1, 1) f32 scalar in SMEM (written on the last step only).
    # acc_*         : (M, 128) f32 VMEM accumulators, live across the grid.
    k = pl.program_id(0)
    nk = pl.num_programs(0)

    @pl.when(k == 0)
    def _init():
        acc_i[...] = jnp.zeros_like(acc_i)
        acc_x[...] = jnp.zeros_like(acc_x)
        acc_t[...] = jnp.zeros_like(acc_t)

    def load_chunk(c, valid_cols=None):
        # Load + cast one 128-lane chunk (cast fused at the load, no full-tile
        # f32 temp round-tripping through VMEM).
        off = pl.multiple_of(c * 128, 128)
        xs = x_ref[:, pl.ds(off, 128)].astype(jnp.float32)
        ts = t_ref[:, pl.ds(off, 128)].astype(jnp.float32)
        if valid_cols is not None:
            # Select-mask (NOT multiply-by-mask) so undefined / NaN padding in
            # the out-of-bounds lanes of the partial block cannot propagate.
            lane = lax.broadcasted_iota(jnp.int32, xs.shape, 1)
            ok = lane < valid_cols
            xs = jnp.where(ok, xs, 0.0)
            ts = jnp.where(ok, ts, 0.0)
        return xs, ts

    def accumulate_tile(num_chunks, partial_cols):
        unroll = min(8, max(num_chunks, 1))
        if carry_in_vregs:
            # Small M: carry partial sums in vregs, one VMEM RMW per grid step.
            pi, px, pt = acc_i[...], acc_x[...], acc_t[...]
            if num_chunks > 0:
                def body(c, carry):
                    ci, cx, ct = carry
                    xs, ts = load_chunk(c)
                    return ci + xs * ts, cx + xs, ct + ts
                pi, px, pt = lax.fori_loop(0, num_chunks, body, (pi, px, pt),
                                           unroll=unroll)
            if partial_cols:
                xs, ts = load_chunk(num_chunks, partial_cols)
                pi, px, pt = pi + xs * ts, px + xs, pt + ts
            acc_i[...] = pi
            acc_x[...] = px
            acc_t[...] = pt
        else:
            # Large M: accumulate straight into the VMEM refs per chunk so vreg
            # pressure stays bounded (vst slot has slack; kernel is HBM-bound).
            def rmw(c, valid_cols=None):
                xs, ts = load_chunk(c, valid_cols)
                acc_i[...] += xs * ts
                acc_x[...] += xs
                acc_t[...] += ts
            if num_chunks > 0:
                def body(c, carry):
                    rmw(c)
                    return carry
                lax.fori_loop(0, num_chunks, body, 0, unroll=unroll)
            if partial_cols:
                rmw(num_chunks, partial_cols)

    full_last_tile = (last_full_chunks == chunks_per_tile
                      and last_partial_cols == 0)
    if full_last_tile:
        # N is a multiple of N_TILE: every tile is identical, never mask.
        accumulate_tile(chunks_per_tile, 0)
    else:
        # Steady-state tiles run completely unmasked; only the final tile pays
        # for the boundary (and only its single boundary chunk is masked).
        @pl.when(k < nk - 1)
        def _steady():
            accumulate_tile(chunks_per_tile, 0)

        @pl.when(k == nk - 1)
        def _boundary():
            accumulate_tile(last_full_chunks, last_partial_cols)

    @pl.when(k == nk - 1)
    def _finalize():
        inter = jnp.sum(acc_i[...], axis=1, keepdims=True)   # (M, 1)
        sx = jnp.sum(acc_x[...], axis=1, keepdims=True)      # (M, 1)
        st = jnp.sum(acc_t[...], axis=1, keepdims=True)      # (M, 1)
        num = 2.0 * inter + smooth
        denom = sx + st + smooth
        if approx_reciprocal:
            # EUP approx reciprocal + one Newton step (~1e-7 relative error vs
            # the exact divide in the PyTorch formula).
            r = pl.reciprocal(denom, approx=True)
            r = r * (2.0 - denom * r)
            dice = num * r
        else:
            dice = num / denom
        o_ref[0, 0] = 1.0 - jnp.sum(dice) / float(m_valid)


def _round_up(x, m):
    return (x + m - 1) // m * m


def _choose_n_tile(m, n, x_bytes, t_bytes, budget_bytes=24 << 20,
                   max_cols_cap=65536):
    """Largest 128-multiple column tile whose double-buffered inputs fit a
    ~24 MiB pipelined window (safe on v5e/v6e/v7x), capped at 64K columns."""
    n_full = _round_up(n, 128)
    per_col = (x_bytes + t_bytes) * 2 * m          # 2 pipeline buffers per input
    max_cols = max(128, budget_bytes // max(per_col, 1))
    n_tile = min(n_full, (max_cols // 128) * 128, max_cols_cap)
    return max(n_tile, 128)


def _vmem_limit_bytes(m, n_tile, x_bytes, t_bytes):
    """Explicit scoped-VMEM limit: double-buffered inputs + accumulators +
    headroom.  Needed on v5e where the default scoped limit is only 16 MiB."""
    in_window = 2 * m * n_tile * (x_bytes + t_bytes)
    scratch = 3 * m * 128 * 4
    need = in_window + scratch + (4 << 20)
    return int(min(max(need, 32 << 20), 64 << 20))


def dice_loss(inp, target, *, num_classes=1, average="micro", smooth=1e-6,
              approx_reciprocal=True):
    if average != "micro":
        raise NotImplementedError("Only micro average is implemented")

    b = inp.shape[0]
    # view(B, num_classes, -1) -> flatten to (M, N); pure metadata, no copy/pad.
    x = jnp.reshape(inp, (b, num_classes, -1))
    t = jnp.reshape(target, (b, num_classes, -1))
    m = b * num_classes
    n = x.shape[-1]
    x = jnp.reshape(x, (m, n))
    t = jnp.reshape(t, (m, n))

    n_tile = _choose_n_tile(m, n, x.dtype.itemsize, t.dtype.itemsize)
    grid_n = -(-n // n_tile)                       # ceil
    n_rem = n - (grid_n - 1) * n_tile              # columns in the last tile
    chunks_per_tile = n_tile // 128
    last_full_chunks = n_rem // 128
    last_partial_cols = n_rem % 128

    kernel = functools.partial(
        _dice_kernel,
        chunks_per_tile=chunks_per_tile,
        last_full_chunks=last_full_chunks,
        last_partial_cols=last_partial_cols,
        m_valid=m,
        smooth=float(smooth),
        carry_in_vregs=(m <= 64),                  # 3*ceil(M/8) carry vregs max
        approx_reciprocal=approx_reciprocal,
    )

    cost = pl.CostEstimate(
        flops=4 * m * n,                           # mul + 3 adds per element
        transcendentals=0,
        bytes_accessed=int(x.size * x.dtype.itemsize
                           + t.size * t.dtype.itemsize + 4),
    )

    out = pl.pallas_call(
        kernel,
        out_shape=jax.ShapeDtypeStruct((1, 1), jnp.float32),
        grid_spec=pltpu.PrefetchScalarGridSpec(
            num_scalar_prefetch=0,
            grid=(grid_n,),
            in_specs=[
                pl.BlockSpec((m, n_tile), lambda k: (0, k)),
                pl.BlockSpec((m, n_tile), lambda k: (0, k)),
            ],
            out_specs=pl.BlockSpec(memory_space=pltpu.MemorySpace.SMEM),
            scratch_shapes=[
                pltpu.VMEM((m, 128), jnp.float32),
                pltpu.VMEM((m, 128), jnp.float32),
                pltpu.VMEM((m, 128), jnp.float32),
            ],
        ),
        compiler_params=pltpu.CompilerParams(
            dimension_semantics=("arbitrary",),
            vmem_limit_bytes=_vmem_limit_bytes(m, n_tile, x.dtype.itemsize,
                                               t.dtype.itemsize),
        ),
        cost_estimate=cost,
    )(x, t)
    return out[0, 0]


def dice_loss_ref(inp, target, *, num_classes=1, smooth=1e-6):
    b = inp.shape[0]
    x = jnp.reshape(inp, (b, num_classes, -1)).astype(jnp.float32)
    t = jnp.reshape(target, (b, num_classes, -1)).astype(jnp.float32)
    inter = jnp.sum(x * t, axis=2)
    dice = (2.0 * inter + smooth) / (jnp.sum(x, axis=2) + jnp.sum(t, axis=2) + smooth)
    return 1.0 - jnp.mean(dice)


if __name__ == "__main__":
    key = jax.random.PRNGKey(0)
    k1, k2, k3, k4 = jax.random.split(key, 4)

    # Case 1: full-tile path (N = 256, multiple of 128), M = 8 rows.
    B, C, H, W = 2, 4, 16, 16
    inp = jax.nn.sigmoid(jax.random.normal(k1, (B, C, H, W), dtype=jnp.float32))
    tgt = (jax.random.uniform(k2, (B, C, H, W)) > 0.5).astype(jnp.float32)
    loss = jax.block_until_ready(dice_loss(inp, tgt, num_classes=C))
    ref = dice_loss_ref(inp, tgt, num_classes=C)
    assert jnp.allclose(loss, ref, atol=1e-5, rtol=1e-5), (loss, ref)

    # Case 2: partial boundary chunk (N = 100, not a multiple of 128), M = 6 rows.
    B2, C2, H2, W2 = 2, 3, 10, 10
    inp2 = jax.nn.sigmoid(jax.random.normal(k3, (B2, C2, H2, W2), dtype=jnp.float32))
    tgt2 = (jax.random.uniform(k4, (B2, C2, H2, W2)) > 0.5).astype(jnp.float32)
    loss2 = jax.block_until_ready(dice_loss(inp2, tgt2, num_classes=C2))
    ref2 = dice_loss_ref(inp2, tgt2, num_classes=C2)
    assert jnp.allclose(loss2, ref2, atol=1e-5, rtol=1e-5), (loss2, ref2)

    # Case 3: bf16 inputs exercise the in-kernel (post-DMA) cast path.
    loss3 = jax.block_until_ready(
        dice_loss(inp.astype(jnp.bfloat16), tgt.astype(jnp.bfloat16), num_classes=C))
    ref3 = dice_loss_ref(inp.astype(jnp.bfloat16), tgt.astype(jnp.bfloat16),
                         num_classes=C)
    assert jnp.allclose(loss3, ref3, atol=1e-5, rtol=1e-5), (loss3, ref3)

    print("KERNEL_OK")
</pallas_src>

<mosaic_0001>
module attributes {stable_mosaic.version = 11 : i64} {
  func.func @_dice_kernel(%arg0: i32, %arg1: memref<8x256xf32, #tpu.memory_space<vmem>>, %arg2: memref<8x256xf32, #tpu.memory_space<vmem>>, %arg3: memref<1x1xf32, #tpu.memory_space<smem>>, %arg4: memref<8x128xf32, #tpu.memory_space<vmem>>, %arg5: memref<8x128xf32, #tpu.memory_space<vmem>>, %arg6: memref<8x128xf32, #tpu.memory_space<vmem>>) attributes {dimension_semantics = [#tpu.dimension_semantics<arbitrary>], iteration_bounds = array<i64: 1>, scalar_prefetch = 0 : i64, scratch_operands = 3 : i64, tpu.core_type = #tpu.core_type<tc>, window_params = [{transform_indices = @transform_0, window_bounds = array<i64: 8, 256>}, {transform_indices = @transform_1, window_bounds = array<i64: 8, 256>}, {transform_indices = @transform_2, window_bounds = array<i64: 1, 1>}]} {
    %c0_i32 = arith.constant 0 : i32
    %0 = arith.cmpi eq, %arg0, %c0_i32 : i32
    %1 = arith.extui %0 : i1 to i32
    %c0_i32_0 = arith.constant 0 : i32
    %2 = arith.cmpi ne, %1, %c0_i32_0 : i32
    scf.if %2 {
      %cst = arith.constant 0.000000e+00 : f32
      %32 = vector.broadcast %cst : f32 to vector<8x128xf32>
      %c0_20 = arith.constant 0 : index
      %c0_21 = arith.constant 0 : index
      %33 = vector.load %arg4[%c0_20, %c0_21] : memref<8x128xf32, #tpu.memory_space<vmem>>, vector<8x128xf32>
      tpu.vector_store %arg4[%c0_20, %c0_21], %32 {strides = array<i32>} : memref<8x128xf32, #tpu.memory_space<vmem>>, vector<8x128xf32>,
      %cst_22 = arith.constant 0.000000e+00 : f32
      %34 = vector.broadcast %cst_22 : f32 to vector<8x128xf32>
      %c0_23 = arith.constant 0 : index
      %c0_24 = arith.constant 0 : index
      %35 = vector.load %arg5[%c0_23, %c0_24] : memref<8x128xf32, #tpu.memory_space<vmem>>, vector<8x128xf32>
      tpu.vector_store %arg5[%c0_23, %c0_24], %34 {strides = array<i32>} : memref<8x128xf32, #tpu.memory_space<vmem>>, vector<8x128xf32>,
      %cst_25 = arith.constant 0.000000e+00 : f32
      %36 = vector.broadcast %cst_25 : f32 to vector<8x128xf32>
      %c0_26 = arith.constant 0 : index
      %c0_27 = arith.constant 0 : index
      %37 = vector.load %arg6[%c0_26, %c0_27] : memref<8x128xf32, #tpu.memory_space<vmem>>, vector<8x128xf32>
      tpu.vector_store %arg6[%c0_26, %c0_27], %36 {strides = array<i32>} : memref<8x128xf32, #tpu.memory_space<vmem>>, vector<8x128xf32>,
    } else {
    }
    %c0 = arith.constant 0 : index
    %c0_1 = arith.constant 0 : index
    %3 = vector.load %arg4[%c0, %c0_1] : memref<8x128xf32, #tpu.memory_space<vmem>>, vector<8x128xf32>
    %c0_2 = arith.constant 0 : index
    %c0_3 = arith.constant 0 : index
    %4 = vector.load %arg5[%c0_2, %c0_3] : memref<8x128xf32, #tpu.memory_space<vmem>>, vector<8x128xf32>
    %c0_4 = arith.constant 0 : index
    %c0_5 = arith.constant 0 : index
    %5 = vector.load %arg6[%c0_4, %c0_5] : memref<8x128xf32, #tpu.memory_space<vmem>>, vector<8x128xf32>
    %c0_i32_6 = arith.constant 0 : i32
    %c128_i32 = arith.constant 128 : i32
    %6 = arith.muli %c0_i32_6, %c128_i32 : i32
    %7 = tpu.assume_multiple %6, 128 : i32
    %c0_7 = arith.constant 0 : index
    %8 = arith.index_cast %7 : i32 to index
    %9 = vector.load %arg1[%c0_7, %8] : memref<8x256xf32, #tpu.memory_space<vmem>>, vector<8x128xf32>
    %c0_8 = arith.constant 0 : index
    %10 = arith.index_cast %7 : i32 to index
    %11 = vector.load %arg2[%c0_8, %10] : memref<8x256xf32, #tpu.memory_space<vmem>>, vector<8x128xf32>
    %12 = arith.mulf %9, %11 : vector<8x128xf32>
    %13 = arith.addf %3, %12 : vector<8x128xf32>
    %14 = arith.addf %4, %9 : vector<8x128xf32>
    %15 = arith.addf %5, %11 : vector<8x128xf32>
    %c1_i32 = arith.constant 1 : i32
    %c128_i32_9 = arith.constant 128 : i32
    %16 = arith.muli %c1_i32, %c128_i32_9 : i32
    %17 = tpu.assume_multiple %16, 128 : i32
    %c0_10 = arith.constant 0 : index
    %18 = arith.index_cast %17 : i32 to index
    %19 = vector.load %arg1[%c0_10, %18] : memref<8x256xf32, #tpu.memory_space<vmem>>, vector<8x128xf32>
    %c0_11 = arith.constant 0 : index
    %20 = arith.index_cast %17 : i32 to index
    %21 = vector.load %arg2[%c0_11, %20] : memref<8x256xf32, #tpu.memory_space<vmem>>, vector<8x128xf32>
    %22 = arith.mulf %19, %21 : vector<8x128xf32>
    %23 = arith.addf %13, %22 : vector<8x128xf32>
    %24 = arith.addf %14, %19 : vector<8x128xf32>
    %25 = arith.addf %15, %21 : vector<8x128xf32>
    %c2_i32 = arith.constant 2 : i32
    %c0_12 = arith.constant 0 : index
    %c0_13 = arith.constant 0 : index
    %26 = vector.load %arg4[%c0_12, %c0_13] : memref<8x128xf32, #tpu.memory_space<vmem>>, vector<8x128xf32>
    tpu.vector_store %arg4[%c0_12, %c0_13], %23 {strides = array<i32>} : memref<8x128xf32, #tpu.memory_space<vmem>>, vector<8x128xf32>,
    %c0_14 = arith.constant 0 : index
    %c0_15 = arith.constant 0 : index
    %27 = vector.load %arg5[%c0_14, %c0_15] : memref<8x128xf32, #tpu.memory_space<vmem>>, vector<8x128xf32>
    tpu.vector_store %arg5[%c0_14, %c0_15], %24 {strides = array<i32>} : memref<8x128xf32, #tpu.memory_space<vmem>>, vector<8x128xf32>,
    %c0_16 = arith.constant 0 : index
    %c0_17 = arith.constant 0 : index
    %28 = vector.load %arg6[%c0_16, %c0_17] : memref<8x128xf32, #tpu.memory_space<vmem>>, vector<8x128xf32>
    tpu.vector_store %arg6[%c0_16, %c0_17], %25 {strides = array<i32>} : memref<8x128xf32, #tpu.memory_space<vmem>>, vector<8x128xf32>,
    %c0_i32_18 = arith.constant 0 : i32
    %29 = arith.cmpi eq, %arg0, %c0_i32_18 : i32
    %30 = arith.extui %29 : i1 to i32
    %c0_i32_19 = arith.constant 0 : i32
    %31 = arith.cmpi ne, %30, %c0_i32_19 : i32
    scf.if %31 {
      %c0_20 = arith.constant 0 : index
      %c0_21 = arith.constant 0 : index
      %32 = vector.load %arg4[%c0_20, %c0_21] : memref<8x128xf32, #tpu.memory_space<vmem>>, vector<8x128xf32>
      %cst = arith.constant dense<0.000000e+00> : vector<8xf32>
      %33 = vector.multi_reduction <add>, %32, %cst [1] : vector<8x128xf32> to vector<8xf32>
      %34 = vector.shape_cast %33 : vector<8xf32> to vector<8x1xf32>
      %c0_22 = arith.constant 0 : index
      %c0_23 = arith.constant 0 : index
      %35 = vector.load %arg5[%c0_22, %c0_23] : memref<8x128xf32, #tpu.memory_space<vmem>>, vector<8x128xf32>
      %cst_24 = arith.constant dense<0.000000e+00> : vector<8xf32>
      %36 = vector.multi_reduction <add>, %35, %cst_24 [1] : vector<8x128xf32> to vector<8xf32>
      %37 = vector.shape_cast %36 : vector<8xf32> to vector<8x1xf32>
      %c0_25 = arith.constant 0 : index
      %c0_26 = arith.constant 0 : index
      %38 = vector.load %arg6[%c0_25, %c0_26] : memref<8x128xf32, #tpu.memory_space<vmem>>, vector<8x128xf32>
      %cst_27 = arith.constant dense<0.000000e+00> : vector<8xf32>
      %39 = vector.multi_reduction <add>, %38, %cst_27 [1] : vector<8x128xf32> to vector<8xf32>
      %40 = vector.shape_cast %39 : vector<8xf32> to vector<8x1xf32>
      %cst_28 = arith.constant 2.000000e+00 : f32
      %41 = vector.broadcast %cst_28 : f32 to vector<8x1xf32>
      %42 = arith.mulf %41, %34 : vector<8x1xf32>
      %cst_29 = arith.constant 9.99999997E-7 : f32
      %43 = vector.broadcast %cst_29 : f32 to vector<8x1xf32>
      %44 = arith.addf %42, %43 : vector<8x1xf32>
      %45 = arith.addf %37, %40 : vector<8x1xf32>
      %cst_30 = arith.constant 9.99999997E-7 : f32
      %46 = vector.broadcast %cst_30 : f32 to vector<8x1xf32>
      %47 = arith.addf %45, %46 : vector<8x1xf32>
      %48 = tpu.reciprocal %47 {approx = true} : vector<8x1xf32> -> vector<8x1xf32>
      %49 = arith.mulf %47, %48 : vector<8x1xf32>
      %cst_31 = arith.constant 2.000000e+00 : f32
      %50 = vector.broadcast %cst_31 : f32 to vector<8x1xf32>
      %51 = arith.subf %50, %49 : vector<8x1xf32>
      %52 = arith.mulf %48, %51 : vector<8x1xf32>
      %53 = arith.mulf %44, %52 : vector<8x1xf32>
      %54 = vector.shape_cast %53 : vector<8x1xf32> to vector<1x8x1xf32>
      %cst_32 = arith.constant dense<0.000000e+00> : vector<1xf32>
      %55 = vector.multi_reduction <add>, %54, %cst_32 [1, 2] : vector<1x8x1xf32> to vector<1xf32>
      %56 = vector.shape_cast %55 : vector<1xf32> to vector<1x1x1xf32>
      %57 = vector.extract %56[0, 0, 0] : f32 from vector<1x1x1xf32>
      %cst_33 = arith.constant 8.000000e+00 : f32
      %58 = arith.divf %57, %cst_33 : f32
      %cst_34 = arith.constant 1.000000e+00 : f32
      %59 = arith.subf %cst_34, %58 : f32
      %c0_35 = arith.constant 0 : index
      %c0_36 = arith.constant 0 : index
      %60 = memref.load %arg3[%c0_35, %c0_36] : memref<1x1xf32, #tpu.memory_space<smem>>
      memref.store %59, %arg3[%c0_35, %c0_36] : memref<1x1xf32, #tpu.memory_space<smem>>
    } else {
    }
    return
  }
  func.func @transform_0(%arg0: i32) -> (i32, i32) {
    %c0_i32 = arith.constant 0 : i32
    %c0_i32_0 = arith.constant 0 : i32
    return %c0_i32, %arg0 : i32, i32
  }
  func.func @transform_1(%arg0: i32) -> (i32, i32) {
    %c0_i32 = arith.constant 0 : i32
    %c0_i32_0 = arith.constant 0 : i32
    return %c0_i32, %arg0 : i32, i32
  }
  func.func @transform_2(%arg0: i32) -> (i32, i32) {
    %c0_i32 = arith.constant 0 : i32
    %c0_i32_0 = arith.constant 0 : i32
    %c0_i32_1 = arith.constant 0 : i32
    return %c0_i32, %c0_i32_0 : i32, i32
  }
}

</mosaic_0001>

<llo_original>
// kernel: tpu_custom_call.1
$region0: #{tpu_custom_call.1}
  #allocation0 [shape = 'u32[]', space=smem, size = 0x4, offset = 0x4, fixed_abs, tag = 'smem constant byte address 0x4 - core index']
  #allocation1 [shape = 'u32[144,128]{1,0:T(1,128)}', space=vmem, size = 0x12000, scoped, tag = 'internal scratch']
  #allocation2 [shape = 'f32[8,128]{1,0:T(8,128)}', space=vmem, size = 0x1000, scoped, tag = 'scratch operand']
  #allocation3 [shape = 'f32[8,128]{1,0:T(8,128)}', space=vmem, size = 0x1000, scoped, tag = 'scratch operand']
  #allocation4 [shape = 'f32[8,128]{1,0:T(8,128)}', space=vmem, size = 0x1000, scoped, tag = 'scratch operand']
  %s0 = inlined_call_operand.hbm [shape: f32[8,256], index: 0, kind: input, shape index: {}]
  %s1 = inlined_call_operand.hbm [shape: f32[8,256], index: 1, kind: input, shape index: {}]
  %s2 = inlined_call_operand.hbm [shape: f32[1,1], index: 2, kind: output, shape index: {}]
  %s3 = sld [smem:[#allocation0]]
  $region34: #{tpu_custom_call.1} parent=0
    _
  %s5 = ssub.s32 1, %s3
  %s6 = scalar_select 0, %s5, %s3
  $region1: #{tpu_custom_call.1} parent=0
    #allocation5 [shape = 'u8[8192]{0}', space=vmem, size = 0x2000, scoped, tag = 'input window, operand 0, single buffered']
    #allocation6 [shape = 's32[1]{0}', space=sflag, size = 0x4, scoped, tag = 'scoped memory for tpu_custom_call.1']
    #allocation7 [shape = 's32[1]{0}', space=sflag, size = 0x4, scoped, tag = 'scoped memory for tpu_custom_call.1']
    #allocation8 [shape = 'u8[8192]{0}', space=vmem, size = 0x2000, scoped, tag = 'input window, operand 1, single buffered']
    #allocation9 [shape = 's32[1]{0}', space=sflag, size = 0x4, scoped, tag = 'scoped memory for tpu_custom_call.1']
    #allocation10 [shape = 'u8[512]{0}', space=smem, size = 0x200, scoped, tag = 'output window, operand 0, single buffered']
    %7 = vsyncpa [#allocation6], 0
    %8 = vsyncpa [#allocation9], 0
    %9 = vsyncpa [#allocation7], 0
    // Predicated region
    $region2: #{tpu_custom_call.1} parent=1 // pred_check
      _
    $region3: #{tpu_custom_call.1} parent=1 // pred_check_branch
      %11 = sbr.rel (0) target = $region5
    $region4: #{tpu_custom_call.1} parent=1 // pred_region
      %s13 = ssub.s32 256, 256
      %14 = vsyncadd [#allocation6], %s13
      %s16 = sshll.u32 [#allocation5], 4
      %s17 = int_to_ptr.vmem [resolvable:$true] %s16
      %19 = dma.hbm_to_vmem [thread:$0]  %s0, 256, %s17, [#allocation6]
    $region5: #{tpu_custom_call.1} parent=1 // pred_fallthru
      _
    // Predicated region
    $region6: #{tpu_custom_call.1} parent=1 // pred_check
      _
    $region7: #{tpu_custom_call.1} parent=1 // pred_check_branch
      %21 = sbr.rel (0) target = $region9
    $region8: #{tpu_custom_call.1} parent=1 // pred_region
      %s23 = ssub.s32 256, 256
      %24 = vsyncadd [#allocation9], %s23
      %s26 = sshll.u32 [#allocation8], 4
      %s27 = int_to_ptr.vmem [resolvable:$true] %s26
      %29 = dma.hbm_to_vmem [thread:$0]  %s1, 256, %s27, [#allocation9]
    $region9: #{tpu_custom_call.1} parent=1 // pred_fallthru
      _
    // Predicated region
    $region10: #{tpu_custom_call.1} parent=1 // pred_check
      _
    $region11: #{tpu_custom_call.1} parent=1 // pred_check_branch
      %31 = sbr.rel (0) target = $region13
    $region12: #{tpu_custom_call.1} parent=1 // pred_region
      %32 = dma.done [#allocation6], 256
    $region13: #{tpu_custom_call.1} parent=1 // pred_fallthru
      _
    // Predicated region
    $region14: #{tpu_custom_call.1} parent=1 // pred_check
      _
    $region15: #{tpu_custom_call.1} parent=1 // pred_check_branch
      %34 = sbr.rel (0) target = $region17
    $region16: #{tpu_custom_call.1} parent=1 // pred_region
      %35 = dma.done [#allocation9], 256
    $region17: #{tpu_custom_call.1} parent=1 // pred_fallthru
      _
    %p36 = scmp.eq.s32.totalorder 0, 0
    // Predicated region
    $region18: #{tpu_custom_call.1} parent=1 // pred_check
      %p37 = pneg %p36
    $region19: #{tpu_custom_call.1} parent=1 // pred_check_branch
      %39 = sbr.rel (%p37) target = $region21
    $region20: #{tpu_custom_call.1} parent=1 // pred_region
      %40 = vst [vmem:[#allocation2] sm:$0xff] 0.0
      %41 = vst [vmem:[#allocation3] sm:$0xff] 0.0
      %42 = vst [vmem:[#allocation4] sm:$0xff] 0.0
    $region21: #{tpu_custom_call.1} parent=1 // pred_fallthru
      _
    %v43 = vld [vmem:[#allocation2] sm:$0xff]
    %v44 = vld [vmem:[#allocation3] sm:$0xff]
    %v45 = vld [vmem:[#allocation4] sm:$0xff]
    %v46 = vld [vmem:[#allocation5] sm:$0xff]
    %v47 = vld [vmem:[#allocation8] sm:$0xff]
    %v48 = vmul.f32 %v46, %v47
    %v49 = vadd.f32 %v43, %v48
    %v50 = vadd.f32 %v44, %v46
    %v51 = vadd.f32 %v45, %v47
    %s52 = scalar_lea.vmem [#allocation5], 8
    %v53 = vld [vmem:[%s52] sm:$0xff]
    %s54 = scalar_lea.vmem [#allocation8], 8
    %v55 = vld [vmem:[%s54] sm:$0xff]
    %v56 = vmul.f32 %v53, %v55
    %v57 = vadd.f32 %v49, %v56
    %v58 = vadd.f32 %v50, %v53
    %v59 = vadd.f32 %v51, %v55
    %60 = vst [vmem:[#allocation2] sm:$0xff] %v57
    %61 = vst [vmem:[#allocation3] sm:$0xff] %v58
    %62 = vst [vmem:[#allocation4] sm:$0xff] %v59
    // Predicated region
    $region22: #{tpu_custom_call.1} parent=1 // pred_check
      %p63 = pneg %p36
    $region23: #{tpu_custom_call.1} parent=1 // pred_check_branch
      %65 = sbr.rel (%p63) target = $region25
    $region24: #{tpu_custom_call.1} parent=1 // pred_region
      %v66 = vld [vmem:[#allocation2] sm:$0xff]
      %67 = vadd.xlane.f32.xlu0 %v66
      %v68 = vpop.xlane.xlu0 %67
      %v69 = vld [vmem:[#allocation3] sm:$0xff]
      %70 = vadd.xlane.f32.xlu0 %v69
      %v71 = vpop.xlane.xlu0 %70
      %v72 = vld [vmem:[#allocation4] sm:$0xff]
      %73 = vadd.xlane.f32.xlu0 %v72
      %v74 = vpop.xlane.xlu0 %73
      %v75 = vmul.f32 %v68, 2.0
      %v76 = vadd.f32 %v75, 1e-06
      %v77 = vadd.f32 %v71, %v74
      %v78 = vadd.f32 %v77, 1e-06
      %v79 = vrcp.pop %v78
      %v80 = vmul.f32 %v78, %v79
      %v81 = vsub.f32 2.0, %v80
      %v82 = vmul.f32 %v79, %v81
      %v83 = vmul.f32 %v76, %v82
      %vm84 = vcmask 7168
      %v85 = vsel %vm84, %v83, 0.0
      %86 = vadd.xlane.f32.xlu0 %v85
      %v87 = vpop.xlane.xlu0 %86
      %v88 = vrot.slane %v87, 4
      %v89 = vadd.f32 %v87, %v88
      %v90 = vrot.slane %v89, 2
      %v91 = vadd.f32 %v89, %v90
      %v92 = vrot.slane %v91, 1
      %v93 = vadd.f32 %v91, %v92
      %s94 = vtos %v93
      %v95 = vrcp.pop 8.0
      %s96 = vtos %v95
      %s97 = smul.f32 %s94, %s96
      %s98 = ssub.f32 1.0, %s97
      %s99 = scalar_lea.smem [#allocation10], 0
      %100 = sst [smem:[%s99]] %s98
    $region25: #{tpu_custom_call.1} parent=1 // pred_fallthru
      _
    // Predicated region
    $region26: #{tpu_custom_call.1} parent=1 // pred_check
      _
    $region27: #{tpu_custom_call.1} parent=1 // pred_check_branch
      %102 = sbr.rel (0) target = $region29
    $region28: #{tpu_custom_call.1} parent=1 // pred_region
      %s104 = ssub.s32 16, 16
      %105 = vsyncadd [#allocation7], %s104
      %108 = dma.smem_to_hbm [#allocation10], 16, %s2, [#allocation7]
    $region29: #{tpu_custom_call.1} parent=1 // pred_fallthru
      _
    // Predicated region
    $region30: #{tpu_custom_call.1} parent=1 // pred_check
      _
    $region31: #{tpu_custom_call.1} parent=1 // pred_check_branch
      %110 = sbr.rel (0) target = $region33
    $region32: #{tpu_custom_call.1} parent=1 // pred_region
      %111 = dma.done [#allocation7], 16
    $region33: #{tpu_custom_call.1} parent=1 // pred_fallthru
      _
    %112 = sfence
    %113 = vsyncpa [#allocation6], 1
    %114 = vsyncpa [#allocation9], 1
    %115 = vsyncpa [#allocation7], 1

</llo_original>
